<compile_context>
chip_gen: v7x
topology: tpu7x:2x2x1
jax: 0.10.0
libtpu: 0.0.40
codegen_flags: <defaults>
</compile_context>

<pallas_src>
import functools

import jax
import jax.numpy as jnp
import numpy as np
from jax.experimental import pallas as pl
from jax.experimental.pallas import tpu as pltpu


def _torch_wrapper_kernel(desc_ref, bias_ref, w1_ref, w1t_ref, b1_ref, w2c_ref,
                          energy_ref, beta_ref):
    """One atom tile.  I/O blocks are in natural (atoms, D) layout; compute runs in the
    transposed (atoms-on-lane) layout via in-kernel XLU transposes (XLU is idle here)."""
    desc_t = desc_ref[...].T                                          # (D, tile)
    # hidden activation: h = tanh(W1^T d + b1); atoms on lanes -> dense VPU/EUP work
    h = jnp.tanh(jnp.dot(w1t_ref[...], desc_t,
                         preferred_element_type=jnp.float32)
                 + b1_ref[...])                                       # (H, tile)

    w2c = w2c_ref[...]                                                # (H, 1)
    hw = h * w2c                                                      # reused twice

    # per-atom energy row: w2 . h + (b2 + ebias[elem])  (bias pre-folded on host)
    energy_ref[...] = (jnp.sum(hw, axis=0, keepdims=True)
                       + bias_ref[...])                               # (1, tile)

    # analytic gradient: beta^T = W1 @ ((1 - h^2) * w2) = W1 @ (w2 - h * hw)
    g = w2c - h * hw                                                  # (H, tile)
    beta_t = jnp.dot(w1_ref[...], g,
                     preferred_element_type=jnp.float32)              # (D, tile)
    beta_ref[...] = beta_t.T                                          # natural (tile, D)


def _round_up(x, m):
    return ((x + m - 1) // m) * m


def _choose_tile(n_atoms, tile_n):
    # The (1, N) energy/bias rows put the atom axis on lanes -> tile must be a
    # multiple of 128 (or the grid-step blocks would violate the (8,128) rule).
    tile = min(_round_up(tile_n, 128), _round_up(n_atoms, 128))
    tile = max(tile, 128)
    # v7x megacore: guarantee >= 2 grid steps so both TensorCores get work.
    if pl.cdiv(n_atoms, tile) < 2 and n_atoms > 128:
        tile = _round_up(pl.cdiv(n_atoms, 2), 128)
    return tile


@functools.partial(jax.jit, static_argnames=("tile_n",))
def torch_wrapper_forward(elems, descriptors, w1, b1, w2, b2, ebias, *, tile_n=8192):
    """Mimics TorchWrapper.forward: returns (beta, energy) instead of writing in place."""
    n_atoms, n_desc = descriptors.shape
    hidden = w1.shape[1]

    tile = _choose_tile(n_atoms, tile_n)
    grid = (pl.cdiv(n_atoms, tile),)

    # --- tiny host-side glue (no layout round-trips over the big arrays) ---
    desc = descriptors.astype(jnp.float32)                            # (N, D), natural
    bias_row = (ebias.astype(jnp.float32)[elems]
                + b2.astype(jnp.float32)).reshape(1, n_atoms)         # (1, N)
    w1f = w1.astype(jnp.float32)                                      # (D, H)
    w1t = w1f.T                                                       # (H, D) (tiny)
    b1_col = b1.astype(jnp.float32).reshape(hidden, 1)                # (H, 1)
    w2_col = w2.astype(jnp.float32).reshape(hidden, 1)                # (H, 1)

    cost = pl.CostEstimate(
        flops=int(n_atoms) * (4 * n_desc * hidden + 5 * hidden),
        transcendentals=int(n_atoms) * hidden,
        bytes_accessed=4 * (2 * n_atoms * n_desc + 2 * n_atoms
                            + 2 * n_desc * hidden + 2 * hidden),
    )

    energy_row, beta = pl.pallas_call(
        _torch_wrapper_kernel,
        out_shape=(
            jax.ShapeDtypeStruct((1, n_atoms), jnp.float32),          # energy row
            jax.ShapeDtypeStruct((n_atoms, n_desc), jnp.float32),     # beta (natural)
        ),
        grid_spec=pltpu.PrefetchScalarGridSpec(
            num_scalar_prefetch=0,
            grid=grid,
            in_specs=[
                pl.BlockSpec((tile, n_desc), lambda i: (i, 0)),       # descriptors
                pl.BlockSpec((1, tile), lambda i: (0, i)),            # b2 + ebias[elem]
                pl.BlockSpec((n_desc, hidden), lambda i: (0, 0)),     # W1 (resident)
                pl.BlockSpec((hidden, n_desc), lambda i: (0, 0)),     # W1^T (resident)
                pl.BlockSpec((hidden, 1), lambda i: (0, 0)),          # b1 (resident)
                pl.BlockSpec((hidden, 1), lambda i: (0, 0)),          # w2 (resident)
            ],
            out_specs=[
                pl.BlockSpec((1, tile), lambda i: (0, i)),            # energy (lane-dense)
                pl.BlockSpec((tile, n_desc), lambda i: (i, 0)),       # beta (natural)
            ],
        ),
        compiler_params=pltpu.CompilerParams(
            dimension_semantics=("parallel",)),
        cost_estimate=cost,
    )(desc, bias_row, w1f, w1t, b1_col, w2_col)

    return beta, energy_row[0]


def _reference(elems, descriptors, w1, b1, w2, b2, ebias):
    """Pure-JAX reference (matches what torch.autograd.grad would produce)."""
    h = jnp.tanh(descriptors @ w1 + b1[None, :])
    energy = h @ w2 + b2 + ebias[elems]
    beta = ((1.0 - h * h) * w2[None, :]) @ w1.T
    return beta, energy


if __name__ == "__main__":
    # Small, deterministic problem: 200 atoms, 16 descriptors, 32 hidden, 4 element types.
    # (200 is deliberately not a multiple of the 128-atom tile so the clipped-tail path
    #  and the 2-step grid are both exercised.)
    n_atoms, n_descriptors, hidden, n_elements = 200, 16, 32, 4

    key = jax.random.PRNGKey(0)
    k_d, k_e, k_w1, k_b1, k_w2, k_b2, k_eb = jax.random.split(key, 7)

    descriptors = jax.random.normal(k_d, (n_atoms, n_descriptors), jnp.float32)
    elems = jax.random.randint(k_e, (n_atoms,), 0, n_elements, jnp.int32)

    # deterministic synthetic MLP parameters (the "model" inside TorchWrapper)
    w1 = 0.3 * jax.random.normal(k_w1, (n_descriptors, hidden), jnp.float32)
    b1 = 0.1 * jax.random.normal(k_b1, (hidden,), jnp.float32)
    w2 = 0.3 * jax.random.normal(k_w2, (hidden,), jnp.float32)
    b2 = 0.1 * jax.random.normal(k_b2, (), jnp.float32)
    ebias = 0.05 * jax.random.normal(k_eb, (n_elements,), jnp.float32)

    beta, energy = torch_wrapper_forward(elems, descriptors, w1, b1, w2, b2, ebias)
    jax.block_until_ready((beta, energy))

    beta_ref, energy_ref = _reference(elems, descriptors, w1, b1, w2, b2, ebias)
    np.testing.assert_allclose(np.asarray(energy), np.asarray(energy_ref),
                               rtol=1e-4, atol=1e-4)
    np.testing.assert_allclose(np.asarray(beta), np.asarray(beta_ref),
                               rtol=1e-4, atol=1e-4)

    print("KERNEL_OK")
</pallas_src>

<mosaic_0001>
module attributes {stable_mosaic.version = 11 : i64} {
  func.func @_torch_wrapper_kernel(%arg0: i32, %arg1: memref<128x16xf32, #tpu.memory_space<vmem>>, %arg2: memref<1x128xf32, #tpu.memory_space<vmem>>, %arg3: memref<16x32xf32, #tpu.memory_space<vmem>>, %arg4: memref<32x16xf32, #tpu.memory_space<vmem>>, %arg5: memref<32x1xf32, #tpu.memory_space<vmem>>, %arg6: memref<32x1xf32, #tpu.memory_space<vmem>>, %arg7: memref<1x128xf32, #tpu.memory_space<vmem>>, %arg8: memref<128x16xf32, #tpu.memory_space<vmem>>) attributes {dimension_semantics = [#tpu.dimension_semantics<parallel>], iteration_bounds = array<i64: 2>, scalar_prefetch = 0 : i64, scratch_operands = 0 : i64, tpu.core_type = #tpu.core_type<tc>, window_params = [{transform_indices = @transform_0, window_bounds = array<i64: 128, 16>}, {transform_indices = @transform_1, window_bounds = array<i64: 1, 128>}, {pipeline_mode = #tpu.pipeline_mode<synchronous>, transform_indices = @transform_2, window_bounds = array<i64: 16, 32>}, {pipeline_mode = #tpu.pipeline_mode<synchronous>, transform_indices = @transform_3, window_bounds = array<i64: 32, 16>}, {pipeline_mode = #tpu.pipeline_mode<synchronous>, transform_indices = @transform_4, window_bounds = array<i64: 32, 1>}, {pipeline_mode = #tpu.pipeline_mode<synchronous>, transform_indices = @transform_5, window_bounds = array<i64: 32, 1>}, {transform_indices = @transform_6, window_bounds = array<i64: 1, 128>}, {transform_indices = @transform_7, window_bounds = array<i64: 128, 16>}]} {
    %c0 = arith.constant 0 : index
    %c0_0 = arith.constant 0 : index
    %0 = vector.load %arg1[%c0, %c0_0] : memref<128x16xf32, #tpu.memory_space<vmem>>, vector<128x16xf32>
    %1 = tpu.transpose %0, [1, 0] : vector<128x16xf32> -> vector<16x128xf32>
    %c0_1 = arith.constant 0 : index
    %c0_2 = arith.constant 0 : index
    %2 = vector.load %arg4[%c0_1, %c0_2] : memref<32x16xf32, #tpu.memory_space<vmem>>, vector<32x16xf32>
    %cst = arith.constant dense<0.000000e+00> : vector<32x128xf32>
    %3 = tpu.matmul %2, %1, %cst {dimension_numbers = #tpu.dot_dimension_numbers<[1], [0], [0], [1], [0, 0, 1, 1], [], []>} : vector<32x16xf32>, vector<16x128xf32>, vector<32x128xf32> -> vector<32x128xf32>
    %c0_3 = arith.constant 0 : index
    %c0_4 = arith.constant 0 : index
    %4 = vector.load %arg5[%c0_3, %c0_4] : memref<32x1xf32, #tpu.memory_space<vmem>>, vector<32x1xf32>
    %5 = vector.broadcast %4 : vector<32x1xf32> to vector<32x128xf32>
    %6 = arith.addf %3, %5 : vector<32x128xf32>
    %7 = math.tanh %6 : vector<32x128xf32>
    %c0_5 = arith.constant 0 : index
    %c0_6 = arith.constant 0 : index
    %8 = vector.load %arg6[%c0_5, %c0_6] : memref<32x1xf32, #tpu.memory_space<vmem>>, vector<32x1xf32>
    %9 = vector.broadcast %8 : vector<32x1xf32> to vector<32x128xf32>
    %10 = arith.mulf %7, %9 : vector<32x128xf32>
    %cst_7 = arith.constant dense<0.000000e+00> : vector<128xf32>
    %11 = vector.multi_reduction <add>, %10, %cst_7 [0] : vector<32x128xf32> to vector<128xf32>
    %12 = vector.shape_cast %11 : vector<128xf32> to vector<1x128xf32>
    %c0_8 = arith.constant 0 : index
    %c0_9 = arith.constant 0 : index
    %13 = vector.load %arg2[%c0_8, %c0_9] : memref<1x128xf32, #tpu.memory_space<vmem>>, vector<1x128xf32>
    %14 = arith.addf %12, %13 : vector<1x128xf32>
    %c0_10 = arith.constant 0 : index
    %c0_11 = arith.constant 0 : index
    %15 = vector.load %arg7[%c0_10, %c0_11] : memref<1x128xf32, #tpu.memory_space<vmem>>, vector<1x128xf32>
    tpu.vector_store %arg7[%c0_10, %c0_11], %14 {strides = array<i32>} : memref<1x128xf32, #tpu.memory_space<vmem>>, vector<1x128xf32>,
    %16 = arith.mulf %7, %10 : vector<32x128xf32>
    %17 = vector.broadcast %8 : vector<32x1xf32> to vector<32x128xf32>
    %18 = arith.subf %17, %16 : vector<32x128xf32>
    %c0_12 = arith.constant 0 : index
    %c0_13 = arith.constant 0 : index
    %19 = vector.load %arg3[%c0_12, %c0_13] : memref<16x32xf32, #tpu.memory_space<vmem>>, vector<16x32xf32>
    %cst_14 = arith.constant dense<0.000000e+00> : vector<16x128xf32>
    %20 = tpu.matmul %19, %18, %cst_14 {dimension_numbers = #tpu.dot_dimension_numbers<[1], [0], [0], [1], [0, 0, 1, 1], [], []>} : vector<16x32xf32>, vector<32x128xf32>, vector<16x128xf32> -> vector<16x128xf32>
    %21 = tpu.transpose %20, [1, 0] : vector<16x128xf32> -> vector<128x16xf32>
    %c0_15 = arith.constant 0 : index
    %c0_16 = arith.constant 0 : index
    %22 = vector.load %arg8[%c0_15, %c0_16] : memref<128x16xf32, #tpu.memory_space<vmem>>, vector<128x16xf32>
    tpu.vector_store %arg8[%c0_15, %c0_16], %21 {strides = array<i32>} : memref<128x16xf32, #tpu.memory_space<vmem>>, vector<128x16xf32>,
    return
  }
  func.func @transform_0(%arg0: i32) -> (i32, i32) {
    %c0_i32 = arith.constant 0 : i32
    %c0_i32_0 = arith.constant 0 : i32
    return %arg0, %c0_i32 : i32, i32
  }
  func.func @transform_1(%arg0: i32) -> (i32, i32) {
    %c0_i32 = arith.constant 0 : i32
    %c0_i32_0 = arith.constant 0 : i32
    return %c0_i32, %arg0 : i32, i32
  }
  func.func @transform_2(%arg0: i32) -> (i32, i32) {
    %c0_i32 = arith.constant 0 : i32
    %c0_i32_0 = arith.constant 0 : i32
    %c0_i32_1 = arith.constant 0 : i32
    return %c0_i32, %c0_i32_0 : i32, i32
  }
  func.func @transform_3(%arg0: i32) -> (i32, i32) {
    %c0_i32 = arith.constant 0 : i32
    %c0_i32_0 = arith.constant 0 : i32
    %c0_i32_1 = arith.constant 0 : i32
    return %c0_i32, %c0_i32_0 : i32, i32
  }
  func.func @transform_4(%arg0: i32) -> (i32, i32) {
    %c0_i32 = arith.constant 0 : i32
    %c0_i32_0 = arith.constant 0 : i32
    %c0_i32_1 = arith.constant 0 : i32
    return %c0_i32, %c0_i32_0 : i32, i32
  }
  func.func @transform_5(%arg0: i32) -> (i32, i32) {
    %c0_i32 = arith.constant 0 : i32
    %c0_i32_0 = arith.constant 0 : i32
    %c0_i32_1 = arith.constant 0 : i32
    return %c0_i32, %c0_i32_0 : i32, i32
  }
  func.func @transform_6(%arg0: i32) -> (i32, i32) {
    %c0_i32 = arith.constant 0 : i32
    %c0_i32_0 = arith.constant 0 : i32
    return %c0_i32, %arg0 : i32, i32
  }
  func.func @transform_7(%arg0: i32) -> (i32, i32) {
    %c0_i32 = arith.constant 0 : i32
    %c0_i32_0 = arith.constant 0 : i32
    return %arg0, %c0_i32 : i32, i32
  }
}

</mosaic_0001>

<llo_original>
// kernel: torch_wrapper_forward.1
$region0: #{torch_wrapper_forward.1}
  #allocation0 [shape = 'u32[]', space=smem, size = 0x4, offset = 0x4, fixed_abs, tag = 'smem constant byte address 0x4 - core index']
  #allocation1 [shape = 'u32[144,128]{1,0:T(1,128)}', space=vmem, size = 0x12000, scoped, tag = 'internal scratch']
  %s0 = inlined_call_operand.vmem [shape: f32[200,16], index: 0, kind: input, shape index: {}]
  %s1 = inlined_call_operand.vmem [shape: f32[1,200], index: 1, kind: input, shape index: {}]
  %s2 = inlined_call_operand.vmem [shape: f32[16,32], index: 2, kind: input, shape index: {}]
  %s3 = inlined_call_operand.vmem [shape: f32[32,16], index: 3, kind: input, shape index: {}]
  %s4 = inlined_call_operand.vmem [shape: f32[32,1], index: 4, kind: input, shape index: {}]
  %s5 = inlined_call_operand.vmem [shape: f32[32,1], index: 5, kind: input, shape index: {}]
  %s6 = inlined_call_operand.hbm [shape: f32[1,200], index: 6, kind: output, shape index: {0}]
  %s7 = inlined_call_operand.vmem [shape: f32[200,16], index: 7, kind: output, shape index: {1}]
  %8 = xla_tuple %s6, %s7
  %s9 = sld [smem:[#allocation0]]
  $region113: #{torch_wrapper_forward.1} parent=0
    _
  %s11 = ssub.s32 1, %s9
  %s12 = scalar_select 0, %s11, %s9
  $region1: #{torch_wrapper_forward.1} parent=0
    #allocation2 [shape = 'u8[1024]{0}', space=vmem, size = 0x400, scoped, tag = 'output window, operand 0']
    #allocation3 [shape = 's32[2]{0}', space=sflag, size = 0x8, scoped, tag = 'scoped memory for torch_wrapper_forward.1']
    #allocation4 [shape = 'u8[131072]{0}', space=vmem, size = 0x20000, scoped, tag = 'output window, operand 1']
    %13 = vsyncpa [#allocation3], 0
    %s14 = scalar_lea.sflag [#allocation3], 1
    %15 = vsyncpa %s14, 0
    loop: start=0, step=1, limit=4
    $region2: #{torch_wrapper_forward.1} parent=1 // loop_pre_header
      _
    $region3: #{torch_wrapper_forward.1} parent=1 // loop_header
      %s17 = sphi 0, %s21
      %p18 = scmp.ge.s32.totalorder %s17, 4
      %s27 = sphi 0, %s29
      %s30 = sphi 0, %s27
      %s31 = sphi 0, %s30
      %s47 = sphi 0, %s31
      %s53 = sphi 0, %s55
      %s56 = sphi 0, %s53
      %s57 = sphi 0, %s56
      %s73 = sphi 0, %s57
      %s77 = sphi 0, %s77
      %s79 = sphi 0, %s77
      %s80 = sphi 0, %s79
      %s94 = sphi 0, %s80
      %s98 = sphi 0, %s98
      %s100 = sphi 0, %s98
      %s101 = sphi 0, %s100
      %s115 = sphi 0, %s101
      %s119 = sphi 0, %s119
      %s121 = sphi 0, %s119
      %s122 = sphi 0, %s121
      %s136 = sphi 0, %s122
      %s140 = sphi 0, %s140
      %s142 = sphi 0, %s140
      %s143 = sphi 0, %s142
      %s157 = sphi 0, %s143
      %s163 = sphi 0, %s165
      %s166 = sphi 0, %s163
      %s167 = sphi 0, %s166
      %s183 = sphi 0, %s167
      %s189 = sphi 0, %s191
      %s192 = sphi 0, %s189
      %s193 = sphi 0, %s192
      %s209 = sphi 0, %s193
    $region4: #{torch_wrapper_forward.1} parent=1 // loop_header_branch
      %20 = sbr.rel (%p18) target = $region8
    $region5: #{torch_wrapper_forward.1} parent=1 // loop_body
      %s22 = ssub.s32 %s17, 1
      %s23 = ssub.s32 %s17, 2
      %s24 = sadd.s32 %s17, 1
      %s25 = ssub.s32 %s17, %s24
      %p26 = scmp.eq.s32.totalorder %s25, 0
      %s28 = sadd.s32 %s27, 1
      %s29 = scalar_select %p26, %s27, %s28
      %p32 = pneg %p26
      %p33 = scmp.eq.s32.totalorder %s17, 1
      %p34 = por %p32, %p33
      %p35 = scmp.ne.s32.totalorder %s27, %s30
      %p36 = scmp.eq.s32.totalorder %s17, 0
      %p37 = por %p35, %p36
      %p38 = scmp.ne.s32.totalorder %s27, %s30
      %p39 = scmp.eq.s32.totalorder %s22, 1
      %p40 = por %p38, %p39
      %p41 = scmp.ne.s32.totalorder %s30, %s31
      %p42 = scmp.eq.s32.totalorder %s22, 0
      %p43 = por %p41, %p42
      %p44 = scmp.ne.s32.totalorder %s30, %s31
      %p45 = scmp.eq.s32.totalorder %s23, 1
      %p46 = por %p44, %p45
      %p48 = scmp.ne.s32.totalorder %s31, %s47
      %p49 = scmp.eq.s32.totalorder %s23, 0
      %p50 = por %p48, %p49
      %s51 = ssub.s32 %s17, %s24
      %p52 = scmp.eq.s32.totalorder %s51, 0
      %s54 = sadd.s32 %s53, 1
      %s55 = scalar_select %p52, %s53, %s54
      %p58 = pneg %p52
      %p59 = scmp.eq.s32.totalorder %s17, 1
      %p60 = por %p58, %p59
      %p61 = scmp.ne.s32.totalorder %s53, %s56
      %p62 = scmp.eq.s32.totalorder %s17, 0
      %p63 = por %p61, %p62
      %p64 = scmp.ne.s32.totalorder %s53, %s56
      %p65 = scmp.eq.s32.totalorder %s22, 1
      %p66 = por %p64, %p65
      %p67 = scmp.ne.s32.totalorder %s56, %s57
      %p68 = scmp.eq.s32.totalorder %s22, 0
      %p69 = por %p67, %p68
      %p70 = scmp.ne.s32.totalorder %s56, %s57
      %p71 = scmp.eq.s32.totalorder %s23, 1
      %p72 = por %p70, %p71
      %p74 = scmp.ne.s32.totalorder %s57, %s73
      %p75 = scmp.eq.s32.totalorder %s23, 0
      %p76 = por %p74, %p75
      %s78 = sadd.s32 %s77, 1
      %p81 = scmp.eq.s32.totalorder %s17, 1
      %p82 = scmp.ne.s32.totalorder %s77, %s79
      %p83 = scmp.eq.s32.totalorder %s17, 0
      %p84 = por %p82, %p83
      %p85 = scmp.ne.s32.totalorder %s77, %s79
      %p86 = scmp.eq.s32.totalorder %s22, 1
      %p87 = por %p85, %p86
      %p88 = scmp.ne.s32.totalorder %s79, %s80
      %p89 = scmp.eq.s32.totalorder %s22, 0
      %p90 = por %p88, %p89
      %p91 = scmp.ne.s32.totalorder %s79, %s80
      %p92 = scmp.eq.s32.totalorder %s23, 1
      %p93 = por %p91, %p92
      %p95 = scmp.ne.s32.totalorder %s80, %s94
      %p96 = scmp.eq.s32.totalorder %s23, 0
      %p97 = por %p95, %p96
      %s99 = sadd.s32 %s98, 1
      %p102 = scmp.eq.s32.totalorder %s17, 1
      %p103 = scmp.ne.s32.totalorder %s98, %s100
      %p104 = scmp.eq.s32.totalorder %s17, 0
      %p105 = por %p103, %p104
      %p106 = scmp.ne.s32.totalorder %s98, %s100
      %p107 = scmp.eq.s32.totalorder %s22, 1
      %p108 = por %p106, %p107
      %p109 = scmp.ne.s32.totalorder %s100, %s101
      %p110 = scmp.eq.s32.totalorder %s22, 0
      %p111 = por %p109, %p110
      %p112 = scmp.ne.s32.totalorder %s100, %s101
      %p113 = scmp.eq.s32.totalorder %s23, 1
      %p114 = por %p112, %p113
      %p116 = scmp.ne.s32.totalorder %s101, %s115
      %p117 = scmp.eq.s32.totalorder %s23, 0
      %p118 = por %p116, %p117
      %s120 = sadd.s32 %s119, 1
      %p123 = scmp.eq.s32.totalorder %s17, 1
      %p124 = scmp.ne.s32.totalorder %s119, %s121
      %p125 = scmp.eq.s32.totalorder %s17, 0
      %p126 = por %p124, %p125
      %p127 = scmp.ne.s32.totalorder %s119, %s121
      %p128 = scmp.eq.s32.totalorder %s22, 1
      %p129 = por %p127, %p128
      %p130 = scmp.ne.s32.totalorder %s121, %s122
      %p131 = scmp.eq.s32.totalorder %s22, 0
      %p132 = por %p130, %p131
      %p133 = scmp.ne.s32.totalorder %s121, %s122
      %p134 = scmp.eq.s32.totalorder %s23, 1
      %p135 = por %p133, %p134
      %p137 = scmp.ne.s32.totalorder %s122, %s136
      %p138 = scmp.eq.s32.totalorder %s23, 0
      %p139 = por %p137, %p138
      %s141 = sadd.s32 %s140, 1
      %p144 = scmp.eq.s32.totalorder %s17, 1
      %p145 = scmp.ne.s32.totalorder %s140, %s142
      %p146 = scmp.eq.s32.totalorder %s17, 0
      %p147 = por %p145, %p146
      %p148 = scmp.ne.s32.totalorder %s140, %s142
      %p149 = scmp.eq.s32.totalorder %s22, 1
      %p150 = por %p148, %p149
      %p151 = scmp.ne.s32.totalorder %s142, %s143
      %p152 = scmp.eq.s32.totalorder %s22, 0
      %p153 = por %p151, %p152
      %p154 = scmp.ne.s32.totalorder %s142, %s143
      %p155 = scmp.eq.s32.totalorder %s23, 1
      %p156 = por %p154, %p155
      %p158 = scmp.ne.s32.totalorder %s143, %s157
      %p159 = scmp.eq.s32.totalorder %s23, 0
      %p160 = por %p158, %p159
      %s161 = ssub.s32 %s17, %s24
      %p162 = scmp.eq.s32.totalorder %s161, 0
      %s164 = sadd.s32 %s163, 1
      %s165 = scalar_select %p162, %s163, %s164
      %p168 = pneg %p162
      %p169 = scmp.eq.s32.totalorder %s17, 1
      %p170 = por %p168, %p169
      %p171 = scmp.ne.s32.totalorder %s163, %s166
      %p172 = scmp.eq.s32.totalorder %s17, 0
      %p173 = por %p171, %p172
      %p174 = scmp.ne.s32.totalorder %s163, %s166
      %p175 = scmp.eq.s32.totalorder %s22, 1
      %p176 = por %p174, %p175
      %p177 = scmp.ne.s32.totalorder %s166, %s167
      %p178 = scmp.eq.s32.totalorder %s22, 0
      %p179 = por %p177, %p178
      %p180 = scmp.ne.s32.totalorder %s166, %s167
      %p181 = scmp.eq.s32.totalorder %s23, 1
      %p182 = por %p180, %p181
      %p184 = scmp.ne.s32.totalorder %s167, %s183
      %p185 = scmp.eq.s32.totalorder %s23, 0
      %p186 = por %p184, %p185
      %s187 = ssub.s32 %s17, %s24
      %p188 = scmp.eq.s32.totalorder %s187, 0
      %s190 = sadd.s32 %s189, 1
      %s191 = scalar_select %p188, %s189, %s190
      %p194 = pneg %p188
      %p195 = scmp.eq.s32.totalorder %s17, 1
      %p196 = por %p194, %p195
      %p197 = scmp.ne.s32.totalorder %s189, %s192
      %p198 = scmp.eq.s32.totalorder %s17, 0
      %p199 = por %p197, %p198
      %p200 = scmp.ne.s32.totalorder %s189, %s192
      %p201 = scmp.eq.s32.totalorder %s22, 1
      %p202 = por %p200, %p201
      %p203 = scmp.ne.s32.totalorder %s192, %s193
      %p204 = scmp.eq.s32.totalorder %s22, 0
      %p205 = por %p203, %p204
      %p206 = scmp.ne.s32.totalorder %s192, %s193
      %p207 = scmp.eq.s32.totalorder %s23, 1
      %p208 = por %p206, %p207
      %p210 = scmp.ne.s32.totalorder %s193, %s209
      %p211 = scmp.eq.s32.totalorder %s23, 0
      %p212 = por %p210, %p211
      %p213 = scmp.le.s32.totalorder 1, %s17
      %p214 = scmp.lt.s32.totalorder %s17, 3
      %p215 = pnand %p213, %p214
      %p216 = pneg %p215
      // Predicated region
      $region9: #{torch_wrapper_forward.1} parent=5 // pred_check
        _
      $region10: #{torch_wrapper_forward.1} parent=5 // pred_check_branch
        %218 = sbr.rel (%p215) target = $region12
      $region11: #{torch_wrapper_forward.1} parent=5 // pred_region
        %s219 = ssub.s32 %s17, 1
        // Predicated region
        $region13: #{torch_wrapper_forward.1} parent=11 // pred_check
          %p220 = pneg %p90
        $region14: #{torch_wrapper_forward.1} parent=11 // pred_check_branch
          %222 = sbr.rel (%p220) target = $region16
        $region15: #{torch_wrapper_forward.1} parent=11 // pred_region
          _
        $region16: #{torch_wrapper_forward.1} parent=11 // pred_fallthru
          _
        // Predicated region
        $region17: #{torch_wrapper_forward.1} parent=11 // pred_check
          %p223 = pneg %p111
        $region18: #{torch_wrapper_forward.1} parent=11 // pred_check_branch
          %225 = sbr.rel (%p223) target = $region20
        $region19: #{torch_wrapper_forward.1} parent=11 // pred_region
          _
        $region20: #{torch_wrapper_forward.1} parent=11 // pred_fallthru
          _
        // Predicated region
        $region21: #{torch_wrapper_forward.1} parent=11 // pred_check
          %p226 = pneg %p132
        $region22: #{torch_wrapper_forward.1} parent=11 // pred_check_branch
          %228 = sbr.rel (%p226) target = $region24
        $region23: #{torch_wrapper_forward.1} parent=11 // pred_region
          _
        $region24: #{torch_wrapper_forward.1} parent=11 // pred_fallthru
          _
        // Predicated region
        $region25: #{torch_wrapper_forward.1} parent=11 // pred_check
          %p229 = pneg %p153
        $region26: #{torch_wrapper_forward.1} parent=11 // pred_check_branch
          %231 = sbr.rel (%p229) target = $region28
        $region27: #{torch_wrapper_forward.1} parent=11 // pred_region
          _
        $region28: #{torch_wrapper_forward.1} parent=11 // pred_fallthru
          _
      $region12: #{torch_wrapper_forward.1} parent=5 // pred_fallthru
        _
      %p232 = scmp.lt.s32.totalorder %s17, 2
      // Predicated region
      $region29: #{torch_wrapper_forward.1} parent=5 // pred_check
        %p233 = pneg %p232
      $region30: #{torch_wrapper_forward.1} parent=5 // pred_check_branch
        %235 = sbr.rel (%p233) target = $region32
      $region31: #{torch_wrapper_forward.1} parent=5 // pred_region
        // Predicated region
        $region33: #{torch_wrapper_forward.1} parent=31 // pred_check
          %p236 = pneg %p37
        $region34: #{torch_wrapper_forward.1} parent=31 // pred_check_branch
          %238 = sbr.rel (%p236) target = $region36
        $region35: #{torch_wrapper_forward.1} parent=31 // pred_region
          %s239 = smul.u32 16, %s17
          %s240 = ssub.s32 25, %s239
          %p241 = scmp.lt.s32.totalorder %s240, 16
          %s242 = scalar_select %p241, %s240, 16
          %s243 = smul.u32 128, %s242
          %p244 = scmp.lt.s32.totalorder %s239, 24
          %s245 = scalar_select %p244, %s239, 24
          %s246 = smul.addr %s245, 8
          %s247 = scalar_lea.vmem %s0, %s246
          %s248 = smul.u32 16, %s17
          %s249 = ssub.s32 25, %s248
          %p250 = scmp.lt.s32.totalorder %s249, 16
          %s251 = scalar_select %p250, %s249, 16
          %s252 = smul.u32 128, %s251
        $region36: #{torch_wrapper_forward.1} parent=31 // pred_fallthru
          _
        // Predicated region
        $region37: #{torch_wrapper_forward.1} parent=31 // pred_check
          %p253 = pneg %p63
        $region38: #{torch_wrapper_forward.1} parent=31 // pred_check_branch
          %255 = sbr.rel (%p253) target = $region40
        $region39: #{torch_wrapper_forward.1} parent=31 // pred_region
          %p256 = scmp.lt.s32.totalorder %s17, 1
          %s257 = scalar_select %p256, %s17, 1
          %s258 = scalar_lea.vmem %s1, %s257
        $region40: #{torch_wrapper_forward.1} parent=31 // pred_fallthru
          _
      $region32: #{torch_wrapper_forward.1} parent=5 // pred_fallthru
        _
      %p259 = scmp.le.s32.totalorder 1, %s17
      %p260 = scmp.lt.s32.totalorder %s17, 3
      %p261 = pnand %p259, %p260
      %p262 = pneg %p261
      // Predicated region
      $region41: #{torch_wrapper_forward.1} parent=5 // pred_check
        _
      $region42: #{torch_wrapper_forward.1} parent=5 // pred_check_branch
        %264 = sbr.rel (%p261) target = $region44
      $region43: #{torch_wrapper_forward.1} parent=5 // pred_region
        %s265 = ssub.s32 %s17, 1
        %s266 = smul.u32 16, %s22
        %s267 = ssub.s32 25, %s266
        %p268 = scmp.lt.s32.totalorder %s267, 16
        %s269 = scalar_select %p268, %s267, 16
        %s270 = smul.u32 128, %s269
        %p271 = scmp.lt.s32.totalorder %s266, 24
        %s272 = scalar_select %p271, %s266, 24
        %s273 = smul.addr %s272, 8
        %s274 = scalar_lea.vmem %s0, %s273
        %p275 = pneg %p43
        %p276 = pneg %p40
        %p277 = scmp.lt.s32.totalorder %s22, 1
        %s278 = scalar_select %p277, %s22, 1
        %s279 = scalar_lea.vmem %s1, %s278
        %p280 = pneg %p69
        %p281 = pneg %p66
        %p282 = pneg %p90
        %p283 = pneg %p87
        %p284 = pneg %p111
        %p285 = pneg %p108
        %p286 = pneg %p132
        %p287 = pneg %p129
        %p288 = pneg %p153
        %p289 = pneg %p150
        %p290 = pneg %p179
        %p291 = pneg %p176
        %s292 = sand.u32 %s166, 1
        %s293 = scalar_lea.sflag [#allocation3], %s292
        %s294 = sand.u32 %s166, 1
        %s295 = scalar_lea.vmem [#allocation2], %s294
        %p296 = pneg %p205
        %p297 = pneg %p202
        %s298 = sand.u32 %s192, 1
        %s299 = sand.u32 %s192, 1
        %s300 = smul.addr %s299, 128
        %s301 = scalar_lea.vmem [#allocation4], %s300
        %s302 = smul.u32 16, %s22
        %s303 = ssub.s32 25, %s302
        %p304 = scmp.lt.s32.totalorder %s303, 16
        %s305 = scalar_select %p304, %s303, 16
        %s306 = smul.u32 128, %s305
        %p307 = scmp.lt.s32.totalorder %s302, 24
        %s308 = scalar_select %p307, %s302, 24
        %s309 = smul.addr %s308, 8
        %s310 = scalar_lea.vmem %s0, %s309
        %s311 = smul.u32 16, %s22
        %s312 = ssub.s32 25, %s311
        %p313 = scmp.lt.s32.totalorder %s312, 16
        %s314 = scalar_select %p313, %s312, 16
        %s315 = smul.u32 128, %s314
        %p316 = scmp.lt.s32.totalorder %s22, 1
        %s317 = scalar_select %p316, %s22, 1
        %s318 = scalar_lea.vmem %s1, %s317
        %s319 = smul.u32 16, %s22
        %s320 = ssub.s32 25, %s319
        %p321 = scmp.lt.s32.totalorder %s320, 16
        %s322 = scalar_select %p321, %s320, 16
        %s323 = smul.u32 128, %s322
        %v324 = vld [vmem:[%s310] sm:$0xff]
        %v325 = vld [vmem:[%s310 + $0x8] sm:$0xff]
        %v326 = vld [vmem:[%s310 + $0x10] sm:$0xff]
        %v327 = vld [vmem:[%s310 + $0x18] sm:$0xff]
        %v328 = vld [vmem:[%s310 + $0x20] sm:$0xff]
        %v329 = vld [vmem:[%s310 + $0x28] sm:$0xff]
        %v330 = vld [vmem:[%s310 + $0x30] sm:$0xff]
        %v331 = vld [vmem:[%s310 + $0x38] sm:$0xff]
        %v332 = vld [vmem:[%s310 + $0x40] sm:$0xff]
        %v333 = vld [vmem:[%s310 + $0x48] sm:$0xff]
        %v334 = vld [vmem:[%s310 + $0x50] sm:$0xff]
        %v335 = vld [vmem:[%s310 + $0x58] sm:$0xff]
        %v336 = vld [vmem:[%s310 + $0x60] sm:$0xff]
        %v337 = vld [vmem:[%s310 + $0x68] sm:$0xff]
        %v338 = vld [vmem:[%s310 + $0x70] sm:$0xff]
        %v339 = vld [vmem:[%s310 + $0x78] sm:$0xff]
        %v340 = vld [vmem:[%s3] sm:$0xff]
        %v341 = vld [vmem:[%s3 + $0x8] sm:$0xff]
        %v342 = vld [vmem:[%s3 + $0x10] sm:$0xff]
        %v343 = vld [vmem:[%s3 + $0x18] sm:$0xff]
        %v344 = vld [vmem:[%s4] sm:$0xff]
        %v345 = vld [vmem:[%s4 + $0x8] sm:$0xff]
        %v346 = vld [vmem:[%s4 + $0x10] sm:$0xff]
        %v347 = vld [vmem:[%s4 + $0x18] sm:$0xff]
        %349 = vset.pattern.permute.xlu0 0
        %350 = vperm.xlu0 %349, %v344
        %v351 = vpop.permute.xlu0 %350
        %354 = vset.pattern.permute.xlu0 0
        %355 = vperm.xlu0 %354, %v345
        %v356 = vpop.permute.xlu0 %355
        %359 = vset.pattern.permute.xlu0 0
        %360 = vperm.xlu0 %359, %v346
        %v361 = vpop.permute.xlu0 %360
        %364 = vset.pattern.permute.xlu0 0
        %365 = vperm.xlu0 %364, %v347
        %v366 = vpop.permute.xlu0 %365
        %vm368 = vcmask 130048
        %v370 = vsel %vm368, %v340, 0
        %v373 = vsel %vm368, %v341, 0
        %v376 = vsel %vm368, %v342, 0
        %v379 = vsel %vm368, %v343, 0
        %v382 = vsel %vm368, %v324, 0
        %v385 = vsel %vm368, %v325, 0
        %v388 = vsel %vm368, %v326, 0
        %v391 = vsel %vm368, %v327, 0
        %v394 = vsel %vm368, %v328, 0
        %v397 = vsel %vm368, %v329, 0
        %v400 = vsel %vm368, %v330, 0
        %v403 = vsel %vm368, %v331, 0
        %v406 = vsel %vm368, %v332, 0
        %v409 = vsel %vm368, %v333, 0
        %v412 = vsel %vm368, %v334, 0
        %v415 = vsel %vm368, %v335, 0
        %v418 = vsel %vm368, %v336, 0
        %v421 = vsel %vm368, %v337, 0
        %v424 = vsel %vm368, %v338, 0
        %v427 = vsel %vm368, %v339, 0
        %429 = vmatprep.subr.mxu0 0.0
        %430 = vmatpush1.xpose.msra.mxu0 %v382
        %431 = vmatprep.subr.mxu0 0.0
        %432 = vmatpush1.xpose.msra.mxu0 %v385
        %433 = vmatprep.subr.mxu0 0.0
        %434 = vmatpush1.xpose.msra.mxu0 %v388
        %435 = vmatprep.subr.mxu0 0.0
        %436 = vmatpush1.xpose.msra.mxu0 %v391
        %437 = vmatprep.subr.mxu0 0.0
        %438 = vmatpush1.xpose.msra.mxu0 %v394
        %439 = vmatprep.subr.mxu0 0.0
        %440 = vmatpush1.xpose.msra.mxu0 %v397
        %441 = vmatprep.subr.mxu0 0.0
        %442 = vmatpush1.xpose.msra.mxu0 %v400
        %443 = vmatprep.subr.mxu0 0.0
        %444 = vmatpush1.xpose.msra.mxu0 %v403
        %445 = vmatprep.subr.mxu0 0.0
        %446 = vmatpush1.xpose.msra.mxu0 %v406
        %447 = vmatprep.subr.mxu0 0.0
        %448 = vmatpush1.xpose.msra.mxu0 %v409
        %449 = vmatprep.subr.mxu0 0.0
        %450 = vmatpush1.xpose.msra.mxu0 %v412
        %451 = vmatprep.subr.mxu0 0.0
        %452 = vmatpush1.xpose.msra.mxu0 %v415
        %453 = vmatprep.subr.mxu0 0.0
        %454 = vmatpush1.xpose.msra.mxu0 %v418
        %455 = vmatprep.subr.mxu0 0.0
        %456 = vmatpush1.xpose.msra.mxu0 %v421
        %457 = vmatprep.subr.mxu0 0.0
        %458 = vmatpush1.xpose.msra.mxu0 %v424
        %459 = vmatprep.subr.mxu0 0.0
        %460 = vmatpush1.xpose.msra.mxu0 %v427
        %461 = vmatprep.subr.mxu0 0.0
        %462 = vmatpush1.xpose.msra.mxu0 0.0
        %463 = vmatprep.subr.mxu0 0.0
        %464 = vmatpush1.xpose.msra.mxu0 0.0
        %465 = vmatprep.subr.mxu0 0.0
        %466 = vmatpush1.xpose.msra.mxu0 0.0
        %467 = vmatprep.subr.mxu0 0.0
        %468 = vmatpush1.xpose.msra.mxu0 0.0
        %469 = vmatprep.subr.mxu0 0.0
        %470 = vmatpush1.xpose.msra.mxu0 0.0
        %471 = vmatprep.subr.mxu0 0.0
        %472 = vmatpush1.xpose.msra.mxu0 0.0
        %473 = vmatprep.subr.mxu0 0.0
        %474 = vmatpush1.xpose.msra.mxu0 0.0
        %475 = vmatprep.subr.mxu0 0.0
        %476 = vmatpush1.xpose.msra.mxu0 0.0
        %477 = vmatprep.subr.mxu0 0.0
        %478 = vmatpush1.xpose.msra.mxu0 0.0
        %479 = vmatprep.subr.mxu0 0.0
        %480 = vmatpush1.xpose.msra.mxu0 0.0
        %481 = vmatprep.subr.mxu0 0.0
        %482 = vmatpush1.xpose.msra.mxu0 0.0
        %483 = vmatprep.subr.mxu0 0.0
        %484 = vmatpush1.xpose.msra.mxu0 0.0
        %485 = vmatprep.subr.mxu0 0.0
        %486 = vmatpush1.xpose.msra.mxu0 0.0
        %487 = vmatprep.subr.mxu0 0.0
        %488 = vmatpush1.xpose.msra.mxu0 0.0
        %489 = vmatprep.subr.mxu0 0.0
        %490 = vmatpush1.xpose.msra.mxu0 0.0
        %491 = vmatprep.subr.mxu0 0.0
        %492 = vmatpush1.xpose.msra.mxu0 0.0
        %493 = vmatprep.mubr.f32.mxu0 0.0
        %494 = vmatmul.mubr.f32.gmra.mrb[0].mxu0 %v370
        %v495 = vpop.f32.mrb[0].mxu0
        %v496 = vadd.f32 %v351, %v495
        %v497 = vpop.f32.mrb[0].mxu0
        %498 = vmatprep.mubr.f32.mxu0 0.0
        %499 = vmatmul.mubr.f32.gmra.mrb[0].mxu0 %v373
        %v500 = vpop.f32.mrb[0].mxu0
        %v501 = vadd.f32 %v356, %v500
        %v502 = vpop.f32.mrb[0].mxu0
        %503 = vmatprep.mubr.f32.mxu0 0.0
        %504 = vmatmul.mubr.f32.gmra.mrb[0].mxu0 %v376
        %v505 = vpop.f32.mrb[0].mxu0
        %v506 = vadd.f32 %v361, %v505
        %v507 = vpop.f32.mrb[0].mxu0
        %508 = vmatprep.mubr.f32.mxu0 0.0
        %509 = vmatmul.mubr.f32.gmra.mrb[0].mxu0 %v379
        %v510 = vpop.f32.mrb[0].mxu0
        %v511 = vadd.f32 %v366, %v510
        %v512 = vpop.f32.mrb[0].mxu0
        %513 = vdwg.mxu0
        %v514 = vtanh.pop %v496
        %v515 = vtanh.pop %v501
        %v516 = vtanh.pop %v506
        %v517 = vtanh.pop %v511
        %v518 = vld [vmem:[%s5] sm:$0xff]
        %v519 = vld [vmem:[%s5 + $0x8] sm:$0xff]
        %v520 = vld [vmem:[%s5 + $0x10] sm:$0xff]
        %v521 = vld [vmem:[%s5 + $0x18] sm:$0xff]
        %523 = vset.pattern.permute.xlu0 0
        %524 = vperm.xlu0 %523, %v518
        %v525 = vpop.permute.xlu0 %524
        %528 = vset.pattern.permute.xlu0 0
        %529 = vperm.xlu0 %528, %v519
        %v530 = vpop.permute.xlu0 %529
        %533 = vset.pattern.permute.xlu0 0
        %534 = vperm.xlu0 %533, %v520
        %v535 = vpop.permute.xlu0 %534
        %538 = vset.pattern.permute.xlu0 0
        %539 = vperm.xlu0 %538, %v521
        %v540 = vpop.permute.xlu0 %539
        %v542 = vmul.f32 %v514, %v525
        %v543 = vmul.f32 %v515, %v530
        %v544 = vmul.f32 %v516, %v535
        %v545 = vmul.f32 %v517, %v540
        %v546 = vadd.f32 %v542, %v543
        %v547 = vadd.f32 %v546, %v544
        %v548 = vadd.f32 %v547, %v545
        %v549 = vrot.slane %v548, 4
        %v550 = vadd.f32 %v548, %v549
        %v551 = vrot.slane %v550, 2
        %v552 = vadd.f32 %v550, %v551
        %v553 = vrot.slane %v552, 1
        %v554 = vadd.f32 %v552, %v553
        %v555 = vld [vmem:[%s318] sm:$0x1]
        %v556 = vadd.f32 %v554, %v555
        %557 = vst [vmem:[%s295] sm:$0x1] %v556
        %v558 = vmul.f32 %v514, %v542
        %v559 = vmul.f32 %v515, %v543
        %v560 = vmul.f32 %v516, %v544
        %v561 = vmul.f32 %v517, %v545
        %v562 = vsub.f32 %v525, %v558
        %v563 = vsub.f32 %v530, %v559
        %v564 = vsub.f32 %v535, %v560
        %v565 = vsub.f32 %v540, %v561
        %v566 = vld [vmem:[%s2] sm:$0xff]
        %v567 = vld [vmem:[%s2 + $0x8] sm:$0xff]
        %vm568 = vcmask 261120
        %v570 = vsel %vm568, %v566, 0
        %v573 = vsel %vm568, %v567, 0
        %575 = vmatprep.subr.mxu0 0.0
        %576 = vmatpush1.msra.mxu0 %v562
        %577 = vmatprep.subr.mxu0 0.0
        %578 = vmatpush1.msra.mxu0 %v563
        %579 = vmatprep.subr.mxu0 0.0
        %580 = vmatpush1.msra.mxu0 %v564
        %581 = vmatprep.subr.mxu0 0.0
        %582 = vmatpush1.msra.mxu0 %v565
        %583 = vmatprep.subr.mxu0 0.0
        %584 = vmatpush1.msra.mxu0 0.0
        %585 = vmatprep.subr.mxu0 0.0
        %586 = vmatpush1.msra.mxu0 0.0
        %587 = vmatprep.subr.mxu0 0.0
        %588 = vmatpush1.msra.mxu0 0.0
        %589 = vmatprep.subr.mxu0 0.0
        %590 = vmatpush1.msra.mxu0 0.0
        %591 = vmatprep.subr.mxu0 0.0
        %592 = vmatpush1.msra.mxu0 0.0
        %593 = vmatprep.subr.mxu0 0.0
        %594 = vmatpush1.msra.mxu0 0.0
        %595 = vmatprep.subr.mxu0 0.0
        %596 = vmatpush1.msra.mxu0 0.0
        %597 = vmatprep.subr.mxu0 0.0
        %598 = vmatpush1.msra.mxu0 0.0
        %599 = vmatprep.subr.mxu0 0.0
        %600 = vmatpush1.msra.mxu0 0.0
        %601 = vmatprep.subr.mxu0 0.0
        %602 = vmatpush1.msra.mxu0 0.0
        %603 = vmatprep.subr.mxu0 0.0
        %604 = vmatpush1.msra.mxu0 0.0
        %605 = vmatprep.subr.mxu0 0.0
        %606 = vmatpush1.msra.mxu0 0.0
        %607 = vmatprep.subr.mxu0 0.0
        %608 = vmatpush1.msra.mxu0 0.0
        %609 = vmatprep.subr.mxu0 0.0
        %610 = vmatpush1.msra.mxu0 0.0
        %611 = vmatprep.subr.mxu0 0.0
        %612 = vmatpush1.msra.mxu0 0.0
        %613 = vmatprep.subr.mxu0 0.0
        %614 = vmatpush1.msra.mxu0 0.0
        %615 = vmatprep.subr.mxu0 0.0
        %616 = vmatpush1.msra.mxu0 0.0
        %617 = vmatprep.subr.mxu0 0.0
        %618 = vmatpush1.msra.mxu0 0.0
        %619 = vmatprep.subr.mxu0 0.0
        %620 = vmatpush1.msra.mxu0 0.0
        %621 = vmatprep.subr.mxu0 0.0
        %622 = vmatpush1.msra.mxu0 0.0
        %623 = vmatprep.subr.mxu0 0.0
        %624 = vmatpush1.msra.mxu0 0.0
        %625 = vmatprep.subr.mxu0 0.0
        %626 = vmatpush1.msra.mxu0 0.0
        %627 = vmatprep.subr.mxu0 0.0
        %628 = vmatpush1.msra.mxu0 0.0
        %629 = vmatprep.subr.mxu0 0.0
        %630 = vmatpush1.msra.mxu0 0.0
        %631 = vmatprep.subr.mxu0 0.0
        %632 = vmatpush1.msra.mxu0 0.0
        %633 = vmatprep.subr.mxu0 0.0
        %634 = vmatpush1.msra.mxu0 0.0
        %635 = vmatprep.subr.mxu0 0.0
        %636 = vmatpush1.msra.mxu0 0.0
        %637 = vmatprep.subr.mxu0 0.0
        %638 = vmatpush1.msra.mxu0 0.0
        %639 = vmatprep.mubr.f32.mxu0 0.0
        %640 = vmatmul.mubr.f32.gmra.mrb[0].mxu0 %v570
        %v641 = vpop.f32.mrb[0].mxu0
        %v642 = vadd.f32 0.0, %v641
        %v643 = vpop.f32.mrb[0].mxu0
        %644 = vmatprep.mubr.f32.mxu0 0.0
        %645 = vmatmul.mubr.f32.gmra.mrb[0].mxu0 %v573
        %v646 = vpop.f32.mrb[0].mxu0
        %v647 = vadd.f32 0.0, %v646
        %v648 = vpop.f32.mrb[0].mxu0
        %649 = vdwg.mxu0
        %650 = vxpose.xlu0.b32.start [1/16] %v642, 128
        %651 = vxpose.xlu0.b32.cont [2/16] %v647, 128
        %652 = vxpose.xlu0.b32.cont [3/16] 0.0, 128
        %653 = vxpose.xlu0.b32.cont [4/16] 0.0, 128
        %654 = vxpose.xlu0.b32.cont [5/16] 0.0, 128
        %655 = vxpose.xlu0.b32.cont [6/16] 0.0, 128
        %656 = vxpose.xlu0.b32.cont [7/16] 0.0, 128
        %657 = vxpose.xlu0.b32.cont [8/16] 0.0, 128
        %658 = vxpose.xlu0.b32.cont [9/16] 0.0, 128
        %659 = vxpose.xlu0.b32.cont [10/16] 0.0, 128
        %660 = vxpose.xlu0.b32.cont [11/16] 0.0, 128
        %661 = vxpose.xlu0.b32.cont [12/16] 0.0, 128
        %662 = vxpose.xlu0.b32.cont [13/16] 0.0, 128
        %663 = vxpose.xlu0.b32.cont [14/16] 0.0, 128
        %664 = vxpose.xlu0.b32.cont [15/16] 0.0, 128
        %665 = vxpose.xlu0.b32.end [16/16] 0.0, 128
        %v666 = vpop.trf.xlu0
        %v667 = vpop.trf.xlu0
        %v668 = vpop.trf.xlu0
        %v669 = vpop.trf.xlu0
        %v670 = vpop.trf.xlu0
        %v671 = vpop.trf.xlu0
        %v672 = vpop.trf.xlu0
        %v673 = vpop.trf.xlu0
        %v674 = vpop.trf.xlu0
        %v675 = vpop.trf.xlu0
        %v676 = vpop.trf.xlu0
        %v677 = vpop.trf.xlu0
        %v678 = vpop.trf.xlu0
        %v679 = vpop.trf.xlu0
        %v680 = vpop.trf.xlu0
        %v681 = vpop.trf.xlu0
        %682 = vst.msk [vmem:[%s301] sm:$0xff] %vm368, %v666
        %683 = vst.msk [vmem:[%s301 + $0x8] sm:$0xff] %vm368, %v667
        %684 = vst.msk [vmem:[%s301 + $0x10] sm:$0xff] %vm368, %v668
        %685 = vst.msk [vmem:[%s301 + $0x18] sm:$0xff] %vm368, %v669
        %686 = vst.msk [vmem:[%s301 + $0x20] sm:$0xff] %vm368, %v670
        %687 = vst.msk [vmem:[%s301 + $0x28] sm:$0xff] %vm368, %v671
        %688 = vst.msk [vmem:[%s301 + $0x30] sm:$0xff] %vm368, %v672
        %689 = vst.msk [vmem:[%s301 + $0x38] sm:$0xff] %vm368, %v673
        %690 = vst.msk [vmem:[%s301 + $0x40] sm:$0xff] %vm368, %v674
        %691 = vst.msk [vmem:[%s301 + $0x48] sm:$0xff] %vm368, %v675
        %692 = vst.msk [vmem:[%s301 + $0x50] sm:$0xff] %vm368, %v676
        %693 = vst.msk [vmem:[%s301 + $0x58] sm:$0xff] %vm368, %v677
        %694 = vst.msk [vmem:[%s301 + $0x60] sm:$0xff] %vm368, %v678
        %695 = vst.msk [vmem:[%s301 + $0x68] sm:$0xff] %vm368, %v679
        %696 = vst.msk [vmem:[%s301 + $0x70] sm:$0xff] %vm368, %v680
        %697 = vst.msk [vmem:[%s301 + $0x78] sm:$0xff] %vm368, %v681
        %s698 = sand.u32 %s166, 1
        %s699 = scalar_lea.sflag [#allocation3], %s698
        %s700 = sand.u32 %s166, 1
        %s701 = scalar_lea.vmem [#allocation2], %s700
        %s702 = sand.u32 %s192, 1
        %s703 = sand.u32 %s192, 1
        %s704 = smul.addr %s703, 128
        %s705 = scalar_lea.vmem [#allocation4], %s704
        // Predicated region
        $region45: #{torch_wrapper_forward.1} parent=43 // pred_check
          %p706 = pneg %p176
        $region46: #{torch_wrapper_forward.1} parent=43 // pred_check_branch
          %708 = sbr.rel (%p706) target = $region48
        $region47: #{torch_wrapper_forward.1} parent=43 // pred_region
          %s710 = ssub.s32 16, 16
          %711 = vsyncadd %s699, %s710
          %s712 = smul.addr %s22, 16
          %s713 = scalar_lea.hbm %s6, %s712
          %s715 = sshll.u32 %s701, 4
          %s716 = int_to_ptr.vmem [resolvable:$true] %s715
          %718 = dma.vmem_to_hbm [thread:$0]  %s716, 16, %s713, %s699
        $region48: #{torch_wrapper_forward.1} parent=43 // pred_fallthru
          _
        // Predicated region
        $region49: #{torch_wrapper_forward.1} parent=43 // pred_check
          %p719 = pneg %p202
        $region50: #{torch_wrapper_forward.1} parent=43 // pred_check_branch
          %721 = sbr.rel (%p719) target = $region52
        $region51: #{torch_wrapper_forward.1} parent=43 // pred_region
          %s722 = smul.u32 16, %s22
          %s723 = ssub.s32 25, %s722
          %p724 = scmp.lt.s32.totalorder %s723, 16
          %s725 = scalar_select %p724, %s723, 16
          %s726 = smul.u32 128, %s725
          %p727 = scmp.ne.s32.totalorder 0, %s726
          %s728 = smul.addr %s722, 8
          %s729 = scalar_lea.vmem %s7, %s728
          // Predicated region
          $region53: #{torch_wrapper_forward.1} parent=51 // pred_check
            %p730 = pneg %p727
          $region54: #{torch_wrapper_forward.1} parent=51 // pred_check_branch
            %732 = sbr.rel (%p730) target = $region56
          $region55: #{torch_wrapper_forward.1} parent=51 // pred_region
            // Predicated region
            $region57: #{torch_wrapper_forward.1} parent=55 // pred_check
              _
            $region58: #{torch_wrapper_forward.1} parent=55 // pred_check_branch
              %734 = sbr.rel (0) target = $region60
            $region59: #{torch_wrapper_forward.1} parent=55 // pred_region
              // Predicated region
              $region79: #{torch_wrapper_forward.1} parent=59 // pred_check
                _
              $region80: #{torch_wrapper_forward.1} parent=59 // pred_check_branch
                %813 = sbr.rel (0) target = $region82
              $region81: #{torch_wrapper_forward.1} parent=59 // pred_region
                %s814 = sshrl.u32 %s725, 4
                // While loop
                $region83: #{torch_wrapper_forward.1} parent=81 // loop_pre_header
                  _
                $region84: #{torch_wrapper_forward.1} parent=81 // loop_header
                  %s816 = sphi 0, %s818
                  %p817 = scmp.ge.s32.totalorder %s816, %s814
                  %s821 = sphi 0, %s858
                  %s822 = sphi %s705, %s861
                  %s823 = sphi %s729, %s862
                $region85: #{torch_wrapper_forward.1} parent=81 // loop_header_branch
                  %820 = sbr.rel (%p817) target = $region89
                $region86: #{torch_wrapper_forward.1} parent=81 // loop_body
                  %v824 = vld [vmem:[%s822] sm:$0xff]
                  %825 = vst [vmem:[%s823] sm:$0xff] %v824
                  %v826 = vld [vmem:[%s822 + $0x8] sm:$0xff]
                  %827 = vst [vmem:[%s823 + $0x8] sm:$0xff] %v826
                  %v828 = vld [vmem:[%s822 + $0x10] sm:$0xff]
                  %829 = vst [vmem:[%s823 + $0x10] sm:$0xff] %v828
                  %v830 = vld [vmem:[%s822 + $0x18] sm:$0xff]
                  %831 = vst [vmem:[%s823 + $0x18] sm:$0xff] %v830
                  %v832 = vld [vmem:[%s822 + $0x20] sm:$0xff]
                  %833 = vst [vmem:[%s823 + $0x20] sm:$0xff] %v832
                  %v834 = vld [vmem:[%s822 + $0x28] sm:$0xff]
                  %835 = vst [vmem:[%s823 + $0x28] sm:$0xff] %v834
                  %v836 = vld [vmem:[%s822 + $0x30] sm:$0xff]
                  %837 = vst [vmem:[%s823 + $0x30] sm:$0xff] %v836
                  %v838 = vld [vmem:[%s822 + $0x38] sm:$0xff]
                  %839 = vst [vmem:[%s823 + $0x38] sm:$0xff] %v838
                  %v840 = vld [vmem:[%s822 + $0x40] sm:$0xff]
                  %841 = vst [vmem:[%s823 + $0x40] sm:$0xff] %v840
                  %v842 = vld [vmem:[%s822 + $0x48] sm:$0xff]
                  %843 = vst [vmem:[%s823 + $0x48] sm:$0xff] %v842
                  %v844 = vld [vmem:[%s822 + $0x50] sm:$0xff]
                  %845 = vst [vmem:[%s823 + $0x50] sm:$0xff] %v844
                  %v846 = vld [vmem:[%s822 + $0x58] sm:$0xff]
                  %847 = vst [vmem:[%s823 + $0x58] sm:$0xff] %v846
                  %v848 = vld [vmem:[%s822 + $0x60] sm:$0xff]
                  %849 = vst [vmem:[%s823 + $0x60] sm:$0xff] %v848
                  %v850 = vld [vmem:[%s822 + $0x68] sm:$0xff]
                  %851 = vst [vmem:[%s823 + $0x68] sm:$0xff] %v850
                  %v852 = vld [vmem:[%s822 + $0x70] sm:$0xff]
                  %853 = vst [vmem:[%s823 + $0x70] sm:$0xff] %v852
                  %v854 = vld [vmem:[%s822 + $0x78] sm:$0xff]
                  %855 = vst [vmem:[%s823 + $0x78] sm:$0xff] %v854
                  %s856 = sadd.s32 1, %s821
                  %p857 = scmp.ge.s32.totalorder %s856, %s814
                  %s858 = scalar_select %p857, 0, %s856
                  %s859 = smul.u32 %s858, 128
                  %s860 = smul.u32 %s858, 128
                  %s861 = scalar_lea.vmem %s705, %s859 [#allocation4]
                  %s862 = scalar_lea.vmem %s729, %s860
                $region87: #{torch_wrapper_forward.1} parent=81 // loop_footer
                  %s818 = sadd.s32 %s816, 1
                $region88: #{torch_wrapper_forward.1} parent=81 // loop_footer_branch
                  %815 = sbr.rel target = $region84
                $region89: #{torch_wrapper_forward.1} parent=81 // loop_exit
                  _
                %s863 = sshrl.u32 %s725, 4
                %s864 = sand.u32 %s725, 15
                %s865 = smul.u32 %s863, 16
                %s866 = smul.u32 8, %s865
                %s867 = scalar_lea.vmem %s705, %s866 [#allocation4]
                %s868 = smul.u32 8, %s865
                %s869 = scalar_lea.vmem %s729, %s868
                // While loop
                $region90: #{torch_wrapper_forward.1} parent=81 // loop_pre_header
                  _
                $region91: #{torch_wrapper_forward.1} parent=81 // loop_header
                  %s871 = sphi 0, %s873
                  %p872 = scmp.ge.s32.totalorder %s871, %s864
                  %s876 = sphi 0, %s883
                  %s877 = sphi %s867, %s886
                  %s878 = sphi %s869, %s887
                $region92: #{torch_wrapper_forward.1} parent=81 // loop_header_branch
                  %875 = sbr.rel (%p872) target = $region96
                $region93: #{torch_wrapper_forward.1} parent=81 // loop_body
                  %v879 = vld [vmem:[%s877] sm:$0xff]
                  %880 = vst [vmem:[%s878] sm:$0xff] %v879
                  %s881 = sadd.s32 1, %s876
                  %p882 = scmp.ge.s32.totalorder %s881, %s864
                  %s883 = scalar_select %p882, 0, %s881
                  %s884 = smul.u32 %s883, 8
                  %s885 = smul.u32 %s883, 8
                  %s886 = scalar_lea.vmem %s867, %s884 [#allocation4]
                  %s887 = scalar_lea.vmem %s869, %s885
                $region94: #{torch_wrapper_forward.1} parent=81 // loop_footer
                  %s873 = sadd.s32 %s871, 1
                $region95: #{torch_wrapper_forward.1} parent=81 // loop_footer_branch
                  %870 = sbr.rel target = $region91
                $region96: #{torch_wrapper_forward.1} parent=81 // loop_exit
                  _
              $region82: #{torch_wrapper_forward.1} parent=59 // pred_fallthru
                _
              // Predicated region
              $region97: #{torch_wrapper_forward.1} parent=59 // pred_check
                _
              $region98: #{torch_wrapper_forward.1} parent=59 // pred_check_branch
                %889 = sbr.rel target = $region100
              $region99: #{torch_wrapper_forward.1} parent=59 // pred_region
                _
              $region100: #{torch_wrapper_forward.1} parent=59 // pred_fallthru
                _
            $region60: #{torch_wrapper_forward.1} parent=55 // pred_fallthru
              _
            // Predicated region
            $region61: #{torch_wrapper_forward.1} parent=55 // pred_check
              _
            $region62: #{torch_wrapper_forward.1} parent=55 // pred_check_branch
              %736 = sbr.rel target = $region64
            $region63: #{torch_wrapper_forward.1} parent=55 // pred_region
              %s738 = sshrl.u32 %s725, 4
              // While loop
              $region65: #{torch_wrapper_forward.1} parent=63 // loop_pre_header
                _
              $region66: #{torch_wrapper_forward.1} parent=63 // loop_header
                %s740 = sphi 0, %s742
                %p741 = scmp.ge.s32.totalorder %s740, %s738
                %s745 = sphi 0, %s782
                %s746 = sphi %s705, %s785
                %s747 = sphi %s729, %s786
              $region67: #{torch_wrapper_forward.1} parent=63 // loop_header_branch
                %744 = sbr.rel (%p741) target = $region71
              $region68: #{torch_wrapper_forward.1} parent=63 // loop_body
                %v748 = vld [vmem:[%s746] sm:$0xff]
                %749 = vst [vmem:[%s747] sm:$0xff] %v748
                %v750 = vld [vmem:[%s746 + $0x8] sm:$0xff]
                %751 = vst [vmem:[%s747 + $0x8] sm:$0xff] %v750
                %v752 = vld [vmem:[%s746 + $0x10] sm:$0xff]
                %753 = vst [vmem:[%s747 + $0x10] sm:$0xff] %v752
                %v754 = vld [vmem:[%s746 + $0x18] sm:$0xff]
                %755 = vst [vmem:[%s747 + $0x18] sm:$0xff] %v754
                %v756 = vld [vmem:[%s746 + $0x20] sm:$0xff]
                %757 = vst [vmem:[%s747 + $0x20] sm:$0xff] %v756
                %v758 = vld [vmem:[%s746 + $0x28] sm:$0xff]
                %759 = vst [vmem:[%s747 + $0x28] sm:$0xff] %v758
                %v760 = vld [vmem:[%s746 + $0x30] sm:$0xff]
                %761 = vst [vmem:[%s747 + $0x30] sm:$0xff] %v760
                %v762 = vld [vmem:[%s746 + $0x38] sm:$0xff]
                %763 = vst [vmem:[%s747 + $0x38] sm:$0xff] %v762
                %v764 = vld [vmem:[%s746 + $0x40] sm:$0xff]
                %765 = vst [vmem:[%s747 + $0x40] sm:$0xff] %v764
                %v766 = vld [vmem:[%s746 + $0x48] sm:$0xff]
                %767 = vst [vmem:[%s747 + $0x48] sm:$0xff] %v766
                %v768 = vld [vmem:[%s746 + $0x50] sm:$0xff]
                %769 = vst [vmem:[%s747 + $0x50] sm:$0xff] %v768
                %v770 = vld [vmem:[%s746 + $0x58] sm:$0xff]
                %771 = vst [vmem:[%s747 + $0x58] sm:$0xff] %v770
                %v772 = vld [vmem:[%s746 + $0x60] sm:$0xff]
                %773 = vst [vmem:[%s747 + $0x60] sm:$0xff] %v772
                %v774 = vld [vmem:[%s746 + $0x68] sm:$0xff]
                %775 = vst [vmem:[%s747 + $0x68] sm:$0xff] %v774
                %v776 = vld [vmem:[%s746 + $0x70] sm:$0xff]
                %777 = vst [vmem:[%s747 + $0x70] sm:$0xff] %v776
                %v778 = vld [vmem:[%s746 + $0x78] sm:$0xff]
                %779 = vst [vmem:[%s747 + $0x78] sm:$0xff] %v778
                %s780 = sadd.s32 1, %s745
                %p781 = scmp.ge.s32.totalorder %s780, %s738
                %s782 = scalar_select %p781, 0, %s780
                %s783 = smul.u32 %s782, 128
                %s784 = smul.u32 %s782, 128
                %s785 = scalar_lea.vmem %s705, %s783 [#allocation4]
                %s786 = scalar_lea.vmem %s729, %s784
              $region69: #{torch_wrapper_forward.1} parent=63 // loop_footer
                %s742 = sadd.s32 %s740, 1
              $region70: #{torch_wrapper_forward.1} parent=63 // loop_footer_branch
                %739 = sbr.rel target = $region66
              $region71: #{torch_wrapper_forward.1} parent=63 // loop_exit
                _
              %s787 = sshrl.u32 %s725, 4
              %s788 = sand.u32 %s725, 15
              %s789 = smul.u32 %s787, 16
              %s790 = smul.u32 8, %s789
              %s791 = scalar_lea.vmem %s705, %s790 [#allocation4]
              %s792 = smul.u32 8, %s789
              %s793 = scalar_lea.vmem %s729, %s792
              // While loop
              $region72: #{torch_wrapper_forward.1} parent=63 // loop_pre_header
                _
              $region73: #{torch_wrapper_forward.1} parent=63 // loop_header
                %s795 = sphi 0, %s797
                %p796 = scmp.ge.s32.totalorder %s795, %s788
                %s800 = sphi 0, %s807
                %s801 = sphi %s791, %s810
                %s802 = sphi %s793, %s811
              $region74: #{torch_wrapper_forward.1} parent=63 // loop_header_branch
                %799 = sbr.rel (%p796) target = $region78
              $region75: #{torch_wrapper_forward.1} parent=63 // loop_body
                %v803 = vld [vmem:[%s801] sm:$0xff]
                %804 = vst [vmem:[%s802] sm:$0xff] %v803
                %s805 = sadd.s32 1, %s800
                %p806 = scmp.ge.s32.totalorder %s805, %s788
                %s807 = scalar_select %p806, 0, %s805
                %s808 = smul.u32 %s807, 8
                %s809 = smul.u32 %s807, 8
                %s810 = scalar_lea.vmem %s791, %s808 [#allocation4]
                %s811 = scalar_lea.vmem %s793, %s809
              $region76: #{torch_wrapper_forward.1} parent=63 // loop_footer
                %s797 = sadd.s32 %s795, 1
              $region77: #{torch_wrapper_forward.1} parent=63 // loop_footer_branch
                %794 = sbr.rel target = $region73
              $region78: #{torch_wrapper_forward.1} parent=63 // loop_exit
                _
            $region64: #{torch_wrapper_forward.1} parent=55 // pred_fallthru
              _
          $region56: #{torch_wrapper_forward.1} parent=51 // pred_fallthru
            _
          %890 = vnop
        $region52: #{torch_wrapper_forward.1} parent=43 // pred_fallthru
          _
      $region44: #{torch_wrapper_forward.1} parent=5 // pred_fallthru
        _
      %p891 = scmp.le.s32.totalorder 2, %s17
      // Predicated region
      $region101: #{torch_wrapper_forward.1} parent=5 // pred_check
        %p892 = pneg %p891
      $region102: #{torch_wrapper_forward.1} parent=5 // pred_check_branch
        %894 = sbr.rel (%p892) target = $region104
      $region103: #{torch_wrapper_forward.1} parent=5 // pred_region
        %s895 = ssub.s32 %s17, 2
        // Predicated region
        $region105: #{torch_wrapper_forward.1} parent=103 // pred_check
          %p896 = pneg %p182
        $region106: #{torch_wrapper_forward.1} parent=103 // pred_check_branch
          %898 = sbr.rel (%p896) target = $region108
        $region107: #{torch_wrapper_forward.1} parent=103 // pred_region
          %s899 = sand.u32 %s167, 1
          %s900 = scalar_lea.sflag [#allocation3], %s899
          %s901 = sand.u32 %s167, 1
          %s902 = scalar_lea.vmem [#allocation2], %s901
          %903 = dma.done %s900, 16
        $region108: #{torch_wrapper_forward.1} parent=103 // pred_fallthru
          _
        // Predicated region
        $region109: #{torch_wrapper_forward.1} parent=103 // pred_check
          %p904 = pneg %p208
        $region110: #{torch_wrapper_forward.1} parent=103 // pred_check_branch
          %906 = sbr.rel (%p904) target = $region112
        $region111: #{torch_wrapper_forward.1} parent=103 // pred_region
          %s907 = sand.u32 %s193, 1
          %s908 = sand.u32 %s193, 1
          %s909 = smul.addr %s908, 128
          %s910 = scalar_lea.vmem [#allocation4], %s909
        $region112: #{torch_wrapper_forward.1} parent=103 // pred_fallthru
          _
      $region104: #{torch_wrapper_forward.1} parent=5 // pred_fallthru
        _
    $region6: #{torch_wrapper_forward.1} parent=1 // loop_footer
      %s21 = sadd.s32 1, %s17
    $region7: #{torch_wrapper_forward.1} parent=1 // loop_footer_branch
      %16 = sbr.rel target = $region3
    $region8: #{torch_wrapper_forward.1} parent=1 // loop_exit
      _
    %911 = vsyncpa [#allocation3], 1
    %s912 = scalar_lea.sflag [#allocation3], 1
    %913 = vsyncpa %s912, 1

</llo_original>
